<compile_context>
chip_gen: v7x
topology: tpu7x:2x2x1
jax: 0.10.0
libtpu: 0.0.40
codegen_flags: <defaults>
</compile_context>

<pallas_src>
import functools

import numpy as np
import jax
import jax.numpy as jnp
from jax.experimental import pallas as pl
from jax.experimental.pallas import tpu as pltpu

_SUBLANE = 8


def _round_up(x, m):
    return ((x + m - 1) // m) * m


def mlp_kernel(x_ref, w1_ref, b1_ref, w2_ref, b2_ref, o_ref):
    # fc1 on the MXU: bf16 operands (x pre-cast in the wrapper), f32 accumulation.
    h = jnp.dot(x_ref[...], w1_ref[...], preferred_element_type=jnp.float32)
    # Bias add + ReLU in f32 on the VPU (v5e has no bf16 VALU).
    h = jnp.maximum(h + b1_ref[...], 0.0)
    # fc2: hidden activations downcast to bf16 for the MXU, accumulation stays f32.
    out = jnp.dot(h.astype(jnp.bfloat16), w2_ref[...],
                  preferred_element_type=jnp.float32)
    out = out + b2_ref[...]
    o_ref[...] = out.astype(o_ref.dtype)


def prepare_params(w1, b1, w2, b2):
    """One-time parameter prep (hoisted out of the per-call path).

    Weights stored (in, out) -- transpose of PyTorch nn.Linear's (out, in); biases 1-D.
    """
    return (w1.astype(jnp.bfloat16),
            b1.astype(jnp.float32).reshape(1, -1),
            w2.astype(jnp.bfloat16),
            b2.astype(jnp.float32).reshape(1, -1))


@functools.partial(jax.jit, static_argnames=("block_rows", "out_dtype"))
def model1_forward(x, w1, b1, w2, b2, *, block_rows=1024, out_dtype=jnp.float32):
    """out = relu(x @ w1 + b1) @ w2 + b2, with params from prepare_params()."""
    B, D = x.shape
    H = w1.shape[1]
    C = w2.shape[1]

    # x feeds the MXU: bf16 halves its HBM read stream (accumulation stays f32).
    x16 = x.astype(jnp.bfloat16)

    # Pad the batch only to the 8-row sublane granularity (<= 7 garbage rows, sliced off).
    B8 = _round_up(B, _SUBLANE)
    if B8 != B:
        x16 = jnp.zeros((B8, D), jnp.bfloat16).at[:B].set(x16)

    # Row tile: large to amortize per-grid-step overhead, but guarantee >= 2 tiles when
    # possible so both v7x TensorCores get work on the "parallel" grid axis.
    TB = min(block_rows, B8)
    if pl.cdiv(B8, TB) < 2 and B8 >= 2 * _SUBLANE:
        TB = _round_up(pl.cdiv(B8, 2), _SUBLANE)
    grid = (pl.cdiv(B8, TB),)   # partial last row-block handled by Pallas masking

    out_itemsize = np.dtype(out_dtype).itemsize
    flops = 2 * B8 * (D * H + H * C)
    bytes_accessed = (B8 * D * 2 + B8 * C * out_itemsize
                      + D * H * 2 + H * C * 2 + (H + C) * 4)

    out = pl.pallas_call(
        mlp_kernel,
        out_shape=jax.ShapeDtypeStruct((B8, C), out_dtype),
        grid=grid,
        in_specs=[
            pl.BlockSpec((TB, D), lambda i: (i, 0)),   # x: tiled over rows
            pl.BlockSpec((D, H), lambda i: (0, 0)),    # w1: VMEM-resident
            pl.BlockSpec((1, H), lambda i: (0, 0)),    # b1: VMEM-resident
            pl.BlockSpec((H, C), lambda i: (0, 0)),    # w2: VMEM-resident
            pl.BlockSpec((1, C), lambda i: (0, 0)),    # b2: VMEM-resident
        ],
        out_specs=pl.BlockSpec((TB, C), lambda i: (i, 0)),
        compiler_params=pltpu.CompilerParams(
            dimension_semantics=("parallel",)),        # v7x: shard row tiles across TCs
        cost_estimate=pl.CostEstimate(flops=flops, transcendentals=0,
                                      bytes_accessed=bytes_accessed),
    )(x16, w1, b1, w2, b2)

    return out[:B]


if __name__ == "__main__":
    # Model1(input_dim=16, num_classes=8), hidden=32, small batch.
    B, D, H, C = 8, 16, 32, 8

    key = jax.random.PRNGKey(0)
    kx, kw1, kb1, kw2, kb2, kx2 = jax.random.split(key, 6)

    x = jax.random.normal(kx, (B, D), dtype=jnp.float32)
    # Weights kept (in, out) vs PyTorch's (out, in); biases 1-D like nn.Linear.
    w1 = jax.random.normal(kw1, (D, H), dtype=jnp.float32) * 0.1
    b1 = jax.random.normal(kb1, (H,), dtype=jnp.float32) * 0.1
    w2 = jax.random.normal(kw2, (H, C), dtype=jnp.float32) * 0.1
    b2 = jax.random.normal(kb2, (C,), dtype=jnp.float32) * 0.1

    # Param prep done once (hoisted out of the per-call path).
    params = prepare_params(w1, b1, w2, b2)

    out = jax.block_until_ready(model1_forward(x, *params))
    ref = jnp.maximum(x @ w1 + b1, 0.0) @ w2 + b2
    assert out.shape == (B, C)
    # bf16 MXU operands -> compare with bf16-appropriate tolerance.
    assert jnp.allclose(out, ref, atol=2e-2, rtol=2e-2), float(jnp.max(jnp.abs(out - ref)))

    # Awkward batch: not a multiple of 8, single-tile-sized -> exercises the minimal
    # sublane padding, the v7x two-tile split, and the partial last row-block.
    B2 = 20
    x2 = jax.random.normal(kx2, (B2, D), dtype=jnp.float32)
    out2 = jax.block_until_ready(model1_forward(x2, *params))
    ref2 = jnp.maximum(x2 @ w1 + b1, 0.0) @ w2 + b2
    assert out2.shape == (B2, C)
    assert jnp.allclose(out2, ref2, atol=2e-2, rtol=2e-2), float(jnp.max(jnp.abs(out2 - ref2)))

    print("KERNEL_OK")
</pallas_src>

<mosaic_0001>
module attributes {stable_mosaic.version = 11 : i64} {
  func.func @mlp_kernel(%arg0: i32, %arg1: memref<8x16xbf16, #tpu.memory_space<vmem>>, %arg2: memref<16x32xbf16, #tpu.memory_space<vmem>>, %arg3: memref<1x32xf32, #tpu.memory_space<vmem>>, %arg4: memref<32x8xbf16, #tpu.memory_space<vmem>>, %arg5: memref<1x8xf32, #tpu.memory_space<vmem>>, %arg6: memref<8x8xf32, #tpu.memory_space<vmem>>) attributes {dimension_semantics = [#tpu.dimension_semantics<parallel>], iteration_bounds = array<i64: 1>, scalar_prefetch = 0 : i64, scratch_operands = 0 : i64, tpu.core_type = #tpu.core_type<tc>, window_params = [{transform_indices = @transform_0, window_bounds = array<i64: 8, 16>}, {pipeline_mode = #tpu.pipeline_mode<synchronous>, transform_indices = @transform_1, window_bounds = array<i64: 16, 32>}, {pipeline_mode = #tpu.pipeline_mode<synchronous>, transform_indices = @transform_2, window_bounds = array<i64: 1, 32>}, {pipeline_mode = #tpu.pipeline_mode<synchronous>, transform_indices = @transform_3, window_bounds = array<i64: 32, 8>}, {pipeline_mode = #tpu.pipeline_mode<synchronous>, transform_indices = @transform_4, window_bounds = array<i64: 1, 8>}, {transform_indices = @transform_5, window_bounds = array<i64: 8, 8>}]} {
    %c0 = arith.constant 0 : index
    %c0_0 = arith.constant 0 : index
    %0 = vector.load %arg1[%c0, %c0_0] : memref<8x16xbf16, #tpu.memory_space<vmem>>, vector<8x16xbf16>
    %c0_1 = arith.constant 0 : index
    %c0_2 = arith.constant 0 : index
    %1 = vector.load %arg2[%c0_1, %c0_2] : memref<16x32xbf16, #tpu.memory_space<vmem>>, vector<16x32xbf16>
    %cst = arith.constant dense<0.000000e+00> : vector<8x32xf32>
    %2 = tpu.matmul %0, %1, %cst {dimension_numbers = #tpu.dot_dimension_numbers<[1], [0], [0], [1], [0, 0, 1, 1], [], []>} : vector<8x16xbf16>, vector<16x32xbf16>, vector<8x32xf32> -> vector<8x32xf32>
    %c0_3 = arith.constant 0 : index
    %c0_4 = arith.constant 0 : index
    %3 = vector.load %arg3[%c0_3, %c0_4] : memref<1x32xf32, #tpu.memory_space<vmem>>, vector<1x32xf32>
    %4 = vector.broadcast %3 : vector<1x32xf32> to vector<8x32xf32>
    %5 = arith.addf %2, %4 : vector<8x32xf32>
    %cst_5 = arith.constant 0.000000e+00 : f32
    %6 = vector.broadcast %cst_5 : f32 to vector<8x32xf32>
    %7 = arith.maximumf %5, %6 : vector<8x32xf32>
    %8 = arith.truncf %7 : vector<8x32xf32> to vector<8x32xbf16>
    %c0_6 = arith.constant 0 : index
    %c0_7 = arith.constant 0 : index
    %9 = vector.load %arg4[%c0_6, %c0_7] : memref<32x8xbf16, #tpu.memory_space<vmem>>, vector<32x8xbf16>
    %cst_8 = arith.constant dense<0.000000e+00> : vector<8x8xf32>
    %10 = tpu.matmul %8, %9, %cst_8 {dimension_numbers = #tpu.dot_dimension_numbers<[1], [0], [0], [1], [0, 0, 1, 1], [], []>} : vector<8x32xbf16>, vector<32x8xbf16>, vector<8x8xf32> -> vector<8x8xf32>
    %c0_9 = arith.constant 0 : index
    %c0_10 = arith.constant 0 : index
    %11 = vector.load %arg5[%c0_9, %c0_10] : memref<1x8xf32, #tpu.memory_space<vmem>>, vector<1x8xf32>
    %12 = vector.broadcast %11 : vector<1x8xf32> to vector<8x8xf32>
    %13 = arith.addf %10, %12 : vector<8x8xf32>
    %c0_11 = arith.constant 0 : index
    %c0_12 = arith.constant 0 : index
    %14 = vector.load %arg6[%c0_11, %c0_12] : memref<8x8xf32, #tpu.memory_space<vmem>>, vector<8x8xf32>
    tpu.vector_store %arg6[%c0_11, %c0_12], %13 {strides = array<i32>} : memref<8x8xf32, #tpu.memory_space<vmem>>, vector<8x8xf32>,
    return
  }
  func.func @transform_0(%arg0: i32) -> (i32, i32) {
    %c0_i32 = arith.constant 0 : i32
    %c0_i32_0 = arith.constant 0 : i32
    return %arg0, %c0_i32 : i32, i32
  }
  func.func @transform_1(%arg0: i32) -> (i32, i32) {
    %c0_i32 = arith.constant 0 : i32
    %c0_i32_0 = arith.constant 0 : i32
    %c0_i32_1 = arith.constant 0 : i32
    return %c0_i32, %c0_i32_0 : i32, i32
  }
  func.func @transform_2(%arg0: i32) -> (i32, i32) {
    %c0_i32 = arith.constant 0 : i32
    %c0_i32_0 = arith.constant 0 : i32
    %c0_i32_1 = arith.constant 0 : i32
    return %c0_i32, %c0_i32_0 : i32, i32
  }
  func.func @transform_3(%arg0: i32) -> (i32, i32) {
    %c0_i32 = arith.constant 0 : i32
    %c0_i32_0 = arith.constant 0 : i32
    %c0_i32_1 = arith.constant 0 : i32
    return %c0_i32, %c0_i32_0 : i32, i32
  }
  func.func @transform_4(%arg0: i32) -> (i32, i32) {
    %c0_i32 = arith.constant 0 : i32
    %c0_i32_0 = arith.constant 0 : i32
    %c0_i32_1 = arith.constant 0 : i32
    return %c0_i32, %c0_i32_0 : i32, i32
  }
  func.func @transform_5(%arg0: i32) -> (i32, i32) {
    %c0_i32 = arith.constant 0 : i32
    %c0_i32_0 = arith.constant 0 : i32
    return %arg0, %c0_i32 : i32, i32
  }
}

</mosaic_0001>

<llo_original>
// kernel: model1_forward.1
$region0: #{model1_forward.1}
  #allocation0 [shape = 'u32[]', space=smem, size = 0x4, offset = 0x4, fixed_abs, tag = 'smem constant byte address 0x4 - core index']
  #allocation1 [shape = 'u32[144,128]{1,0:T(1,128)}', space=vmem, size = 0x12000, scoped, tag = 'internal scratch']
  %s0 = inlined_call_operand.vmem [shape: bf16[8,16], index: 0, kind: input, shape index: {}]
  %s1 = inlined_call_operand.vmem [shape: bf16[16,32], index: 1, kind: input, shape index: {}]
  %s2 = inlined_call_operand.vmem [shape: f32[1,32], index: 2, kind: input, shape index: {}]
  %s3 = inlined_call_operand.vmem [shape: bf16[32,8], index: 3, kind: input, shape index: {}]
  %s4 = inlined_call_operand.vmem [shape: f32[1,8], index: 4, kind: input, shape index: {}]
  %s5 = inlined_call_operand.hbm [shape: f32[8,8], index: 5, kind: output, shape index: {}]
  %s6 = sld [smem:[#allocation0]]
  $region30: #{model1_forward.1} parent=0
    _
  %s8 = ssub.s32 1, %s6
  %s9 = scalar_select 0, %s8, %s6
  $region1: #{model1_forward.1} parent=0
    #allocation2 [shape = 'u8[4096]{0}', space=vmem, size = 0x1000, scoped, tag = 'output window, operand 0, single buffered']
    #allocation3 [shape = 's32[1]{0}', space=sflag, size = 0x4, scoped, tag = 'scoped memory for model1_forward.1']
    %10 = vsyncpa [#allocation3], 0
    // Predicated region
    $region2: #{model1_forward.1} parent=1 // pred_check
      _
    $region3: #{model1_forward.1} parent=1 // pred_check_branch
      %12 = sbr.rel (0) target = $region5
    $region4: #{model1_forward.1} parent=1 // pred_region
      _
    $region5: #{model1_forward.1} parent=1 // pred_fallthru
      _
    // Predicated region
    $region6: #{model1_forward.1} parent=1 // pred_check
      _
    $region7: #{model1_forward.1} parent=1 // pred_check_branch
      %14 = sbr.rel (0) target = $region9
    $region8: #{model1_forward.1} parent=1 // pred_region
      _
    $region9: #{model1_forward.1} parent=1 // pred_fallthru
      _
    // Predicated region
    $region10: #{model1_forward.1} parent=1 // pred_check
      _
    $region11: #{model1_forward.1} parent=1 // pred_check_branch
      %16 = sbr.rel (0) target = $region13
    $region12: #{model1_forward.1} parent=1 // pred_region
      _
    $region13: #{model1_forward.1} parent=1 // pred_fallthru
      _
    // Predicated region
    $region14: #{model1_forward.1} parent=1 // pred_check
      _
    $region15: #{model1_forward.1} parent=1 // pred_check_branch
      %18 = sbr.rel (0) target = $region17
    $region16: #{model1_forward.1} parent=1 // pred_region
      _
    $region17: #{model1_forward.1} parent=1 // pred_fallthru
      _
    // Predicated region
    $region18: #{model1_forward.1} parent=1 // pred_check
      _
    $region19: #{model1_forward.1} parent=1 // pred_check_branch
      %20 = sbr.rel (0) target = $region21
    $region20: #{model1_forward.1} parent=1 // pred_region
      _
    $region21: #{model1_forward.1} parent=1 // pred_fallthru
      _
    %v22 = vld [vmem:[%s0] sm:$0xf]
    %v23 = vld [vmem:[%s1] sm:$0xf]
    %v24 = vld [vmem:[%s1 + $0x4] sm:$0xf]
    %v25 = vld [vmem:[%s2] sm:$0x1]
    %v27 = vlaneseq
    %v28 = vshrl.u32 %v27, 7
    %v29 = vsub.s32 0, %v28
    %v30 = vrot.slane %v25, %v29
    %v34 = vunpack.c.l.b16 %v23
    %v35 = vunpack.c.l.b16 %v24
    %v36 = vpack.c.b16 %v35, %v34
    %vm38 = vcmask 130048
    %v40 = vsel %vm38, %v22, 0
    %42 = vmatprep.subr.bf16.mxu0 0
    %43 = vmatpush1.bf16.msra.mxu0 %v36
    %44 = vmatprep.subr.bf16.mxu0 0
    %45 = vmatpush1.bf16.msra.mxu0 0
    %46 = vmatprep.subr.bf16.mxu0 0
    %47 = vmatpush1.bf16.msra.mxu0 0
    %48 = vmatprep.subr.bf16.mxu0 0
    %49 = vmatpush1.bf16.msra.mxu0 0
    %50 = vmatprep.subr.bf16.mxu0 0
    %51 = vmatpush1.bf16.msra.mxu0 0
    %52 = vmatprep.subr.bf16.mxu0 0
    %53 = vmatpush1.bf16.msra.mxu0 0
    %54 = vmatprep.subr.bf16.mxu0 0
    %55 = vmatpush1.bf16.msra.mxu0 0
    %56 = vmatprep.subr.bf16.mxu0 0
    %57 = vmatpush1.bf16.msra.mxu0 0
    %58 = vmatprep.subr.bf16.mxu0 0
    %59 = vmatpush1.bf16.msra.mxu0 0
    %60 = vmatprep.subr.bf16.mxu0 0
    %61 = vmatpush1.bf16.msra.mxu0 0
    %62 = vmatprep.subr.bf16.mxu0 0
    %63 = vmatpush1.bf16.msra.mxu0 0
    %64 = vmatprep.subr.bf16.mxu0 0
    %65 = vmatpush1.bf16.msra.mxu0 0
    %66 = vmatprep.subr.bf16.mxu0 0
    %67 = vmatpush1.bf16.msra.mxu0 0
    %68 = vmatprep.subr.bf16.mxu0 0
    %69 = vmatpush1.bf16.msra.mxu0 0
    %70 = vmatprep.subr.bf16.mxu0 0
    %71 = vmatpush1.bf16.msra.mxu0 0
    %72 = vmatprep.subr.bf16.mxu0 0
    %73 = vmatpush1.bf16.msra.mxu0 0
    %74 = vmatprep.mubr.bf16.mxu0 0
    %75 = vmatmul.mubr.bf16.gmra.mrb[0].mxu0 %v40
    %v76 = vpop.f32.mrb[0].mxu0
    %v77 = vadd.f32 %v30, %v76
    %v78 = vpop.f32.mrb[0].mxu0
    %v79 = vpop.f32.mrb[0].mxu0
    %v80 = vpop.f32.mrb[0].mxu0
    %81 = vdwg.mxu0
    %v82 = vmax.f32 %v77, 0.0
    %v83 = vpack.c.bf16 %v82, %v82
    %v84 = vld [vmem:[%s3] sm:$0xf]
    %v85 = vld [vmem:[%s3 + $0x4] sm:$0xf]
    %v86 = vld [vmem:[%s3 + $0x8] sm:$0xf]
    %v87 = vld [vmem:[%s3 + $0xc] sm:$0xf]
    %v88 = vld [vmem:[%s4] sm:$0x1]
    %v90 = vlaneseq
    %v91 = vshrl.u32 %v90, 7
    %v92 = vsub.s32 0, %v91
    %v93 = vrot.slane %v88, %v92
    %v99 = vunpack.c.l.b16 %v84
    %v100 = vunpack.c.l.b16 %v85
    %v101 = vunpack.c.l.b16 %v86
    %v102 = vunpack.c.l.b16 %v87
    %v103 = vpack.c.b16 %v100, %v99
    %v104 = vpack.c.b16 %v102, %v101
    %vm107 = vcmask 261120
    %v109 = vsel %vm107, %v83, 0
    %111 = vmatprep.subr.bf16.mxu0 0
    %112 = vmatpush1.bf16.msra.mxu0 %v103
    %113 = vmatprep.subr.bf16.mxu0 0
    %114 = vmatpush1.bf16.msra.mxu0 %v104
    %115 = vmatprep.subr.bf16.mxu0 0
    %116 = vmatpush1.bf16.msra.mxu0 0
    %117 = vmatprep.subr.bf16.mxu0 0
    %118 = vmatpush1.bf16.msra.mxu0 0
    %119 = vmatprep.subr.bf16.mxu0 0
    %120 = vmatpush1.bf16.msra.mxu0 0
    %121 = vmatprep.subr.bf16.mxu0 0
    %122 = vmatpush1.bf16.msra.mxu0 0
    %123 = vmatprep.subr.bf16.mxu0 0
    %124 = vmatpush1.bf16.msra.mxu0 0
    %125 = vmatprep.subr.bf16.mxu0 0
    %126 = vmatpush1.bf16.msra.mxu0 0
    %127 = vmatprep.subr.bf16.mxu0 0
    %128 = vmatpush1.bf16.msra.mxu0 0
    %129 = vmatprep.subr.bf16.mxu0 0
    %130 = vmatpush1.bf16.msra.mxu0 0
    %131 = vmatprep.subr.bf16.mxu0 0
    %132 = vmatpush1.bf16.msra.mxu0 0
    %133 = vmatprep.subr.bf16.mxu0 0
    %134 = vmatpush1.bf16.msra.mxu0 0
    %135 = vmatprep.subr.bf16.mxu0 0
    %136 = vmatpush1.bf16.msra.mxu0 0
    %137 = vmatprep.subr.bf16.mxu0 0
    %138 = vmatpush1.bf16.msra.mxu0 0
    %139 = vmatprep.subr.bf16.mxu0 0
    %140 = vmatpush1.bf16.msra.mxu0 0
    %141 = vmatprep.subr.bf16.mxu0 0
    %142 = vmatpush1.bf16.msra.mxu0 0
    %143 = vmatprep.mubr.bf16.mxu0 0
    %144 = vmatmul.mubr.bf16.gmra.mrb[0].mxu0 %v109
    %v145 = vpop.f32.mrb[0].mxu0
    %v146 = vadd.f32 %v93, %v145
    %v147 = vpop.f32.mrb[0].mxu0
    %v148 = vpop.f32.mrb[0].mxu0
    %v149 = vpop.f32.mrb[0].mxu0
    %150 = vdwg.mxu0
    %vm151 = vcmask 64512
    %152 = vst.msk [vmem:[#allocation2] sm:$0xff] %vm151, %v146
    // Predicated region
    $region22: #{model1_forward.1} parent=1 // pred_check
      _
    $region23: #{model1_forward.1} parent=1 // pred_check_branch
      %154 = sbr.rel (0) target = $region25
    $region24: #{model1_forward.1} parent=1 // pred_region
      %s156 = ssub.s32 128, 128
      %157 = vsyncadd [#allocation3], %s156
      %s159 = sshll.u32 [#allocation2], 4
      %s160 = int_to_ptr.vmem [resolvable:$true] %s159
      %162 = dma.vmem_to_hbm [thread:$0]  %s160, 128, %s5, [#allocation3]
    $region25: #{model1_forward.1} parent=1 // pred_fallthru
      _
    // Predicated region
    $region26: #{model1_forward.1} parent=1 // pred_check
      _
    $region27: #{model1_forward.1} parent=1 // pred_check_branch
      %164 = sbr.rel (0) target = $region29
    $region28: #{model1_forward.1} parent=1 // pred_region
      %165 = dma.done [#allocation3], 128
    $region29: #{model1_forward.1} parent=1 // pred_fallthru
      _
    %166 = vsyncpa [#allocation3], 1

</llo_original>
